<compile_context>
chip_gen: v7x
topology: tpu7x:2x2x1
jax: 0.10.0
libtpu: 0.0.40
codegen_flags: <defaults>
</compile_context>

<pallas_src>
import functools

import jax
import jax.numpy as jnp
from jax import lax
from jax.experimental import pallas as pl
from jax.experimental.pallas import tpu as pltpu


def _round_up(n, m):
    return ((n + m - 1) // m) * m


def _vmem_capacity_bytes():
    """Physical per-core VMEM; conservative fallback if the query fails."""
    try:
        return int(pltpu.get_tpu_info().vmem_capacity_bytes)
    except Exception:
        return 64 * 1024 * 1024  # v7x per-TensorCore VMEM (smallest current gen)


def _nconv_kernel(a_ref, x_ref, o_ref):
    # a_ref: (V, W)      adjacency, VMEM-resident (constant index_map => 1 DMA)
    # x_ref: (Bb, W, L)  native-layout tile of x, Bb = fused (n, c) batch block
    # o_ref: (Bb, V, L)  matching native-layout output tile
    a = a_ref[...]
    bb = x_ref.shape[0]

    def step(b):
        o_ref[b] = jnp.dot(
            a, x_ref[b], preferred_element_type=jnp.float32
        ).astype(o_ref.dtype)

    if bb <= 8:
        for b in range(bb):  # tiny blocks: static unroll
            step(b)
    else:
        def body(b, carry):
            step(b)
            return carry

        lax.fori_loop(0, bb, body, 0)


@functools.partial(jax.jit, static_argnames=("block_batch", "min_grid_steps"))
def nconv(x, A, *, block_batch=None, min_grid_steps=4):
    """Pallas equivalent of torch.einsum('ncwl,vw->ncvl', (x, A))."""
    N, C, W, L = x.shape
    V, W2 = A.shape
    assert W == W2, "A's second dim must match x's node dim (w)"

    B = N * C
    xr = x.reshape(B, W, L)  # leading-dim merge: bitcast, no HBM copy

    x_item = x.dtype.itemsize
    a_item = A.dtype.itemsize

    # (8,128)-padded VMEM footprint of one batch item's x-tile + out-tile.
    per_item = (_round_up(W, 8) + _round_up(V, 8)) * _round_up(L, 128) * x_item
    a_vmem = 2 * _round_up(V, 8) * _round_up(W, 128) * a_item  # double-buffered A

    cap = _vmem_capacity_bytes()
    # -> 112 MiB on 128-MiB v5e/v6e, 48 MiB on 64-MiB v7x.
    vmem_limit = max(32 << 20, min(cap - (16 << 20), 112 << 20))
    tile_budget = max(vmem_limit - a_vmem - (8 << 20), 4 << 20)

    if block_batch is None:
        bb_vmem = max(1, tile_budget // (2 * per_item))   # double-buffered x+out
        bb_par = max(1, pl.cdiv(B, min_grid_steps))        # >= min_grid_steps blocks
        block_batch = int(max(1, min(B, bb_vmem, bb_par)))
    grid = (pl.cdiv(B, block_batch),)

    cost = pl.CostEstimate(
        flops=2 * B * V * W * L,
        transcendentals=0,
        bytes_accessed=B * L * (W + V) * x_item + V * W * a_item,
    )

    out = pl.pallas_call(
        _nconv_kernel,
        out_shape=jax.ShapeDtypeStruct((B, V, L), x.dtype),
        grid_spec=pltpu.PrefetchScalarGridSpec(
            num_scalar_prefetch=0,
            grid=grid,
            in_specs=[
                # A: same block every step -> single DMA, stays VMEM-resident.
                pl.BlockSpec((V, W), lambda i: (0, 0)),
                # x: one native-layout (Bb, W, L) batch block per grid step.
                pl.BlockSpec((block_batch, W, L), lambda i: (i, 0, 0)),
            ],
            out_specs=pl.BlockSpec((block_batch, V, L), lambda i: (i, 0, 0)),
        ),
        compiler_params=pltpu.CompilerParams(
            dimension_semantics=("parallel",),   # megacore-shardable on v7x
            vmem_limit_bytes=int(vmem_limit),
        ),
        cost_estimate=cost,
    )(A, xr)

    return out.reshape(N, C, V, L)  # leading-dim split: bitcast, no HBM copy


if __name__ == "__main__":
    key = jax.random.PRNGKey(0)
    kx, ka = jax.random.split(key)

    # x: (batch, channels, num_nodes, seq_len), A: (num_nodes_out, num_nodes)
    N, C, W, L = 2, 4, 16, 16
    V = 16

    x = jax.random.normal(kx, (N, C, W, L), dtype=jnp.float32)
    A = jax.random.normal(ka, (V, W), dtype=jnp.float32)

    out = jax.block_until_ready(nconv(x, A))
    ref = jnp.einsum("ncwl,vw->ncvl", x, A)
    assert out.shape == (N, C, V, L)
    assert jnp.allclose(out, ref, atol=1e-5, rtol=1e-5), "f32 mismatch vs reference"

    # bf16 at the HBM boundary (perf feedback): halves x/out bytes on a
    # bandwidth-bound op; in-kernel accumulation stays f32.
    out_bf16 = jax.block_until_ready(
        nconv(x.astype(jnp.bfloat16), A.astype(jnp.bfloat16)))
    assert out_bf16.dtype == jnp.bfloat16
    assert jnp.allclose(out_bf16.astype(jnp.float32), ref, atol=2e-1, rtol=2e-2), \
        "bf16 mismatch vs reference"

    print("KERNEL_OK")
</pallas_src>

<mosaic_0001>
module attributes {stable_mosaic.version = 11 : i64} {
  func.func @_nconv_kernel(%arg0: i32, %arg1: memref<16x16xf32, #tpu.memory_space<vmem>>, %arg2: memref<2x16x16xf32, #tpu.memory_space<vmem>>, %arg3: memref<2x16x16xf32, #tpu.memory_space<vmem>>) attributes {dimension_semantics = [#tpu.dimension_semantics<parallel>], iteration_bounds = array<i64: 4>, scalar_prefetch = 0 : i64, scratch_operands = 0 : i64, tpu.core_type = #tpu.core_type<tc>, window_params = [{pipeline_mode = #tpu.pipeline_mode<synchronous>, transform_indices = @transform_0, window_bounds = array<i64: 16, 16>}, {transform_indices = @transform_1, window_bounds = array<i64: 2, 16, 16>}, {transform_indices = @transform_2, window_bounds = array<i64: 2, 16, 16>}]} {
    %c0 = arith.constant 0 : index
    %c0_0 = arith.constant 0 : index
    %0 = vector.load %arg1[%c0, %c0_0] : memref<16x16xf32, #tpu.memory_space<vmem>>, vector<16x16xf32>
    %c0_1 = arith.constant 0 : index
    %c0_2 = arith.constant 0 : index
    %c0_3 = arith.constant 0 : index
    %1 = vector.load %arg2[%c0_1, %c0_2, %c0_3] : memref<2x16x16xf32, #tpu.memory_space<vmem>>, vector<1x16x16xf32>
    %2 = vector.shape_cast %1 : vector<1x16x16xf32> to vector<16x16xf32>
    %cst = arith.constant dense<0.000000e+00> : vector<16x16xf32>
    %3 = tpu.matmul %0, %2, %cst {dimension_numbers = #tpu.dot_dimension_numbers<[1], [0], [0], [1], [0, 0, 1, 1], [], []>} : vector<16x16xf32>, vector<16x16xf32>, vector<16x16xf32> -> vector<16x16xf32>
    %c0_4 = arith.constant 0 : index
    %c0_5 = arith.constant 0 : index
    %c0_6 = arith.constant 0 : index
    %4 = vector.load %arg3[%c0_4, %c0_5, %c0_6] : memref<2x16x16xf32, #tpu.memory_space<vmem>>, vector<1x16x16xf32>
    %5 = vector.shape_cast %4 : vector<1x16x16xf32> to vector<16x16xf32>
    %6 = vector.shape_cast %3 : vector<16x16xf32> to vector<1x16x16xf32>
    tpu.vector_store %arg3[%c0_4, %c0_5, %c0_6], %6 {strides = array<i32>} : memref<2x16x16xf32, #tpu.memory_space<vmem>>, vector<1x16x16xf32>,
    %c1 = arith.constant 1 : index
    %c0_7 = arith.constant 0 : index
    %c0_8 = arith.constant 0 : index
    %7 = vector.load %arg2[%c1, %c0_7, %c0_8] : memref<2x16x16xf32, #tpu.memory_space<vmem>>, vector<1x16x16xf32>
    %8 = vector.shape_cast %7 : vector<1x16x16xf32> to vector<16x16xf32>
    %cst_9 = arith.constant dense<0.000000e+00> : vector<16x16xf32>
    %9 = tpu.matmul %0, %8, %cst_9 {dimension_numbers = #tpu.dot_dimension_numbers<[1], [0], [0], [1], [0, 0, 1, 1], [], []>} : vector<16x16xf32>, vector<16x16xf32>, vector<16x16xf32> -> vector<16x16xf32>
    %c1_10 = arith.constant 1 : index
    %c0_11 = arith.constant 0 : index
    %c0_12 = arith.constant 0 : index
    %10 = vector.load %arg3[%c1_10, %c0_11, %c0_12] : memref<2x16x16xf32, #tpu.memory_space<vmem>>, vector<1x16x16xf32>
    %11 = vector.shape_cast %10 : vector<1x16x16xf32> to vector<16x16xf32>
    %12 = vector.shape_cast %9 : vector<16x16xf32> to vector<1x16x16xf32>
    tpu.vector_store %arg3[%c1_10, %c0_11, %c0_12], %12 {strides = array<i32>} : memref<2x16x16xf32, #tpu.memory_space<vmem>>, vector<1x16x16xf32>,
    return
  }
  func.func @transform_0(%arg0: i32) -> (i32, i32) {
    %c0_i32 = arith.constant 0 : i32
    %c0_i32_0 = arith.constant 0 : i32
    %c0_i32_1 = arith.constant 0 : i32
    return %c0_i32, %c0_i32_0 : i32, i32
  }
  func.func @transform_1(%arg0: i32) -> (i32, i32, i32) {
    %c0_i32 = arith.constant 0 : i32
    %c0_i32_0 = arith.constant 0 : i32
    %c0_i32_1 = arith.constant 0 : i32
    return %arg0, %c0_i32, %c0_i32_0 : i32, i32, i32
  }
  func.func @transform_2(%arg0: i32) -> (i32, i32, i32) {
    %c0_i32 = arith.constant 0 : i32
    %c0_i32_0 = arith.constant 0 : i32
    %c0_i32_1 = arith.constant 0 : i32
    return %arg0, %c0_i32, %c0_i32_0 : i32, i32, i32
  }
}

</mosaic_0001>

<llo_original>
// kernel: nconv.1
$region0: #{nconv.1}
  #allocation0 [shape = 'u32[]', space=smem, size = 0x4, offset = 0x4, fixed_abs, tag = 'smem constant byte address 0x4 - core index']
  #allocation1 [shape = 'u32[144,128]{1,0:T(1,128)}', space=vmem, size = 0x12000, scoped, tag = 'internal scratch']
  %s0 = inlined_call_operand.hbm [shape: f32[16,16], index: 0, kind: input, shape index: {}]
  %s1 = inlined_call_operand.hbm [shape: f32[8,16,16], index: 1, kind: input, shape index: {}]
  %s2 = inlined_call_operand.hbm [shape: f32[8,16,16], index: 2, kind: output, shape index: {}]
  %s3 = sld [smem:[#allocation0]]
  $region49: #{nconv.1} parent=0
    _
  %s5 = ssub.s32 1, %s3
  %s6 = scalar_select 0, %s5, %s3
  $region1: #{nconv.1} parent=0
    #allocation2 [shape = 'u8[8192]{0}', space=vmem, size = 0x2000, scoped, tag = 'input window, operand 0, single buffered']
    #allocation3 [shape = 's32[2]{0}', space=sflag, size = 0x8, scoped, tag = 'scoped memory for nconv.1']
    #allocation4 [shape = 's32[2]{0}', space=sflag, size = 0x8, scoped, tag = 'scoped memory for nconv.1']
    #allocation5 [shape = 'u8[32768]{0}', space=vmem, size = 0x8000, scoped, tag = 'input window, operand 1']
    #allocation6 [shape = 's32[2]{0}', space=sflag, size = 0x8, scoped, tag = 'scoped memory for nconv.1']
    #allocation7 [shape = 'u8[32768]{0}', space=vmem, size = 0x8000, scoped, tag = 'output window, operand 0']
    %7 = vsyncpa [#allocation3], 0
    %8 = vsyncpa [#allocation6], 0
    %s9 = scalar_lea.sflag [#allocation6], 1
    %10 = vsyncpa %s9, 0
    %11 = vsyncpa [#allocation4], 0
    %s12 = scalar_lea.sflag [#allocation4], 1
    %13 = vsyncpa %s12, 0
    loop: start=0, step=1, limit=6
    $region2: #{nconv.1} parent=1 // loop_pre_header
      _
    $region3: #{nconv.1} parent=1 // loop_header
      %s15 = sphi 0, %s19
      %p16 = scmp.ge.s32.totalorder %s15, 6
      %s23 = sphi 0, %s23
      %s25 = sphi 0, %s23
      %s26 = sphi 0, %s25
      %s40 = sphi 0, %s26
      %s46 = sphi 0, %s48
      %s49 = sphi 0, %s46
      %s50 = sphi 0, %s49
      %s66 = sphi 0, %s50
      %s72 = sphi 0, %s74
      %s75 = sphi 0, %s72
      %s76 = sphi 0, %s75
      %s92 = sphi 0, %s76
    $region4: #{nconv.1} parent=1 // loop_header_branch
      %18 = sbr.rel (%p16) target = $region8
    $region5: #{nconv.1} parent=1 // loop_body
      %s20 = ssub.s32 %s15, 1
      %s21 = ssub.s32 %s15, 2
      %s22 = sadd.s32 %s15, 1
      %s24 = sadd.s32 %s23, 1
      %p27 = scmp.eq.s32.totalorder %s15, 3
      %p28 = scmp.ne.s32.totalorder %s23, %s25
      %p29 = scmp.eq.s32.totalorder %s15, 0
      %p30 = por %p28, %p29
      %p31 = scmp.ne.s32.totalorder %s23, %s25
      %p32 = scmp.eq.s32.totalorder %s20, 3
      %p33 = por %p31, %p32
      %p34 = scmp.ne.s32.totalorder %s25, %s26
      %p35 = scmp.eq.s32.totalorder %s20, 0
      %p36 = por %p34, %p35
      %p37 = scmp.ne.s32.totalorder %s25, %s26
      %p38 = scmp.eq.s32.totalorder %s21, 3
      %p39 = por %p37, %p38
      %p41 = scmp.ne.s32.totalorder %s26, %s40
      %p42 = scmp.eq.s32.totalorder %s21, 0
      %p43 = por %p41, %p42
      %s44 = ssub.s32 %s15, %s22
      %p45 = scmp.eq.s32.totalorder %s44, 0
      %s47 = sadd.s32 %s46, 1
      %s48 = scalar_select %p45, %s46, %s47
      %p51 = pneg %p45
      %p52 = scmp.eq.s32.totalorder %s15, 3
      %p53 = por %p51, %p52
      %p54 = scmp.ne.s32.totalorder %s46, %s49
      %p55 = scmp.eq.s32.totalorder %s15, 0
      %p56 = por %p54, %p55
      %p57 = scmp.ne.s32.totalorder %s46, %s49
      %p58 = scmp.eq.s32.totalorder %s20, 3
      %p59 = por %p57, %p58
      %p60 = scmp.ne.s32.totalorder %s49, %s50
      %p61 = scmp.eq.s32.totalorder %s20, 0
      %p62 = por %p60, %p61
      %p63 = scmp.ne.s32.totalorder %s49, %s50
      %p64 = scmp.eq.s32.totalorder %s21, 3
      %p65 = por %p63, %p64
      %p67 = scmp.ne.s32.totalorder %s50, %s66
      %p68 = scmp.eq.s32.totalorder %s21, 0
      %p69 = por %p67, %p68
      %s70 = ssub.s32 %s15, %s22
      %p71 = scmp.eq.s32.totalorder %s70, 0
      %s73 = sadd.s32 %s72, 1
      %s74 = scalar_select %p71, %s72, %s73
      %p77 = pneg %p71
      %p78 = scmp.eq.s32.totalorder %s15, 3
      %p79 = por %p77, %p78
      %p80 = scmp.ne.s32.totalorder %s72, %s75
      %p81 = scmp.eq.s32.totalorder %s15, 0
      %p82 = por %p80, %p81
      %p83 = scmp.ne.s32.totalorder %s72, %s75
      %p84 = scmp.eq.s32.totalorder %s20, 3
      %p85 = por %p83, %p84
      %p86 = scmp.ne.s32.totalorder %s75, %s76
      %p87 = scmp.eq.s32.totalorder %s20, 0
      %p88 = por %p86, %p87
      %p89 = scmp.ne.s32.totalorder %s75, %s76
      %p90 = scmp.eq.s32.totalorder %s21, 3
      %p91 = por %p89, %p90
      %p93 = scmp.ne.s32.totalorder %s76, %s92
      %p94 = scmp.eq.s32.totalorder %s21, 0
      %p95 = por %p93, %p94
      %p96 = scmp.le.s32.totalorder 1, %s15
      %p97 = scmp.lt.s32.totalorder %s15, 5
      %p98 = pnand %p96, %p97
      %p99 = pneg %p98
      // Predicated region
      $region9: #{nconv.1} parent=5 // pred_check
        _
      $region10: #{nconv.1} parent=5 // pred_check_branch
        %101 = sbr.rel (%p98) target = $region12
      $region11: #{nconv.1} parent=5 // pred_region
        %s102 = ssub.s32 %s15, 1
        // Predicated region
        $region13: #{nconv.1} parent=11 // pred_check
          %p103 = pneg %p36
        $region14: #{nconv.1} parent=11 // pred_check_branch
          %105 = sbr.rel (%p103) target = $region16
        $region15: #{nconv.1} parent=11 // pred_region
          %s107 = ssub.s32 256, 256
          %108 = vsyncadd [#allocation3], %s107
          %s109 = sshll.u32 [#allocation2], 4
          %s110 = int_to_ptr.vmem [resolvable:$true] %s109
          %115 = dma.hbm_to_vmem [thread:$0]  %s0, 256, %s110, [#allocation3], 128, 128, 8
        $region16: #{nconv.1} parent=11 // pred_fallthru
          _
      $region12: #{nconv.1} parent=5 // pred_fallthru
        _
      %p116 = scmp.lt.s32.totalorder %s15, 4
      // Predicated region
      $region17: #{nconv.1} parent=5 // pred_check
        %p117 = pneg %p116
      $region18: #{nconv.1} parent=5 // pred_check_branch
        %119 = sbr.rel (%p117) target = $region20
      $region19: #{nconv.1} parent=5 // pred_region
        // Predicated region
        $region21: #{nconv.1} parent=19 // pred_check
          %p120 = pneg %p56
        $region22: #{nconv.1} parent=19 // pred_check_branch
          %122 = sbr.rel (%p120) target = $region24
        $region23: #{nconv.1} parent=19 // pred_region
          %s123 = sand.u32 %s46, 1
          %s124 = scalar_lea.sflag [#allocation6], %s123
          %s125 = sand.u32 %s46, 1
          %s126 = smul.addr %s125, 32
          %s127 = scalar_lea.vmem [#allocation5], %s126
          %s128 = smul.u32 2, %s15
          %s130 = ssub.s32 512, 512
          %131 = vsyncadd %s124, %s130
          %s132 = smul.addr %s128, 2
          %s133 = smul.addr %s132, 128
          %s134 = scalar_lea.hbm %s1, %s133
          %s135 = sshll.u32 %s127, 4
          %s136 = int_to_ptr.vmem [resolvable:$true] %s135
          %141 = dma.hbm_to_vmem [thread:$0]  %s134, 512, %s136, %s124, 128, 128, 8
        $region24: #{nconv.1} parent=19 // pred_fallthru
          _
      $region20: #{nconv.1} parent=5 // pred_fallthru
        _
      %p142 = scmp.le.s32.totalorder 1, %s15
      %p143 = scmp.lt.s32.totalorder %s15, 5
      %p144 = pnand %p142, %p143
      %p145 = pneg %p144
      // Predicated region
      $region25: #{nconv.1} parent=5 // pred_check
        _
      $region26: #{nconv.1} parent=5 // pred_check_branch
        %147 = sbr.rel (%p144) target = $region28
      $region27: #{nconv.1} parent=5 // pred_region
        %s148 = ssub.s32 %s15, 1
        // Predicated region
        $region29: #{nconv.1} parent=27 // pred_check
          %p149 = pneg %p36
        $region30: #{nconv.1} parent=27 // pred_check_branch
          %151 = sbr.rel (%p149) target = $region32
        $region31: #{nconv.1} parent=27 // pred_region
          %152 = dma.done [#allocation3], 256
        $region32: #{nconv.1} parent=27 // pred_fallthru
          _
        %s153 = sand.u32 %s49, 1
        %s154 = scalar_lea.sflag [#allocation6], %s153
        %s155 = sand.u32 %s49, 1
        %s156 = smul.addr %s155, 32
        %s157 = scalar_lea.vmem [#allocation5], %s156
        // Predicated region
        $region33: #{nconv.1} parent=27 // pred_check
          %p158 = pneg %p62
        $region34: #{nconv.1} parent=27 // pred_check_branch
          %160 = sbr.rel (%p158) target = $region36
        $region35: #{nconv.1} parent=27 // pred_region
          %161 = dma.done %s154, 512
        $region36: #{nconv.1} parent=27 // pred_fallthru
          _
        %p162 = pneg %p36
        %p163 = pneg %p33
        %s164 = sand.u32 %s49, 1
        %s165 = scalar_lea.sflag [#allocation6], %s164
        %s166 = sand.u32 %s49, 1
        %s167 = smul.addr %s166, 32
        %s168 = scalar_lea.vmem [#allocation5], %s167
        %p169 = pneg %p62
        %p170 = pneg %p59
        %p171 = pneg %p88
        %p172 = pneg %p85
        %s173 = sand.u32 %s75, 1
        %s174 = scalar_lea.sflag [#allocation4], %s173
        %s175 = sand.u32 %s75, 1
        %s176 = smul.addr %s175, 32
        %s177 = scalar_lea.vmem [#allocation7], %s176
        %s178 = smul.u32 2, %s20
        %s179 = smul.u32 2, %s20
        %v180 = vld [vmem:[#allocation2] sm:$0xff]
        %v181 = vld [vmem:[#allocation2 + $0x8] sm:$0xff]
        %v182 = vld [vmem:[%s157] sm:$0xff]
        %v183 = vld [vmem:[%s157 + $0x8] sm:$0xff]
        %vm184 = vcmask 130048
        %v186 = vsel %vm184, %v180, 0
        %v189 = vsel %vm184, %v181, 0
        %191 = vmatprep.subr.mxu0 0.0
        %192 = vmatpush1.msra.mxu0 %v182
        %193 = vmatprep.subr.mxu0 0.0
        %194 = vmatpush1.msra.mxu0 %v183
        %195 = vmatprep.subr.mxu0 0.0
        %196 = vmatpush1.msra.mxu0 0.0
        %197 = vmatprep.subr.mxu0 0.0
        %198 = vmatpush1.msra.mxu0 0.0
        %199 = vmatprep.subr.mxu0 0.0
        %200 = vmatpush1.msra.mxu0 0.0
        %201 = vmatprep.subr.mxu0 0.0
        %202 = vmatpush1.msra.mxu0 0.0
        %203 = vmatprep.subr.mxu0 0.0
        %204 = vmatpush1.msra.mxu0 0.0
        %205 = vmatprep.subr.mxu0 0.0
        %206 = vmatpush1.msra.mxu0 0.0
        %207 = vmatprep.subr.mxu0 0.0
        %208 = vmatpush1.msra.mxu0 0.0
        %209 = vmatprep.subr.mxu0 0.0
        %210 = vmatpush1.msra.mxu0 0.0
        %211 = vmatprep.subr.mxu0 0.0
        %212 = vmatpush1.msra.mxu0 0.0
        %213 = vmatprep.subr.mxu0 0.0
        %214 = vmatpush1.msra.mxu0 0.0
        %215 = vmatprep.subr.mxu0 0.0
        %216 = vmatpush1.msra.mxu0 0.0
        %217 = vmatprep.subr.mxu0 0.0
        %218 = vmatpush1.msra.mxu0 0.0
        %219 = vmatprep.subr.mxu0 0.0
        %220 = vmatpush1.msra.mxu0 0.0
        %221 = vmatprep.subr.mxu0 0.0
        %222 = vmatpush1.msra.mxu0 0.0
        %223 = vmatprep.subr.mxu0 0.0
        %224 = vmatpush1.msra.mxu0 0.0
        %225 = vmatprep.subr.mxu0 0.0
        %226 = vmatpush1.msra.mxu0 0.0
        %227 = vmatprep.subr.mxu0 0.0
        %228 = vmatpush1.msra.mxu0 0.0
        %229 = vmatprep.subr.mxu0 0.0
        %230 = vmatpush1.msra.mxu0 0.0
        %231 = vmatprep.subr.mxu0 0.0
        %232 = vmatpush1.msra.mxu0 0.0
        %233 = vmatprep.subr.mxu0 0.0
        %234 = vmatpush1.msra.mxu0 0.0
        %235 = vmatprep.subr.mxu0 0.0
        %236 = vmatpush1.msra.mxu0 0.0
        %237 = vmatprep.subr.mxu0 0.0
        %238 = vmatpush1.msra.mxu0 0.0
        %239 = vmatprep.subr.mxu0 0.0
        %240 = vmatpush1.msra.mxu0 0.0
        %241 = vmatprep.subr.mxu0 0.0
        %242 = vmatpush1.msra.mxu0 0.0
        %243 = vmatprep.subr.mxu0 0.0
        %244 = vmatpush1.msra.mxu0 0.0
        %245 = vmatprep.subr.mxu0 0.0
        %246 = vmatpush1.msra.mxu0 0.0
        %247 = vmatprep.subr.mxu0 0.0
        %248 = vmatpush1.msra.mxu0 0.0
        %249 = vmatprep.subr.mxu0 0.0
        %250 = vmatpush1.msra.mxu0 0.0
        %251 = vmatprep.subr.mxu0 0.0
        %252 = vmatpush1.msra.mxu0 0.0
        %253 = vmatprep.subr.mxu0 0.0
        %254 = vmatpush1.msra.mxu0 0.0
        %255 = vmatprep.mubr.f32.mxu0 0.0
        %256 = vmatmul.mubr.f32.gmra.mrb[0].mxu0 %v186
        %v257 = vpop.f32.mrb[0].mxu0
        %v258 = vadd.f32 0.0, %v257
        %v259 = vpop.f32.mrb[0].mxu0
        %260 = vmatprep.mubr.f32.mxu0 0.0
        %261 = vmatmul.mubr.f32.gmra.mrb[0].mxu0 %v189
        %v262 = vpop.f32.mrb[0].mxu0
        %v263 = vadd.f32 0.0, %v262
        %v264 = vpop.f32.mrb[0].mxu0
        %265 = vdwg.mxu0
        %266 = vst.msk [vmem:[%s177] sm:$0xff] %vm184, %v258
        %267 = vst.msk [vmem:[%s177 + $0x8] sm:$0xff] %vm184, %v263
        %s268 = scalar_lea.vmem %s157, 16 [#allocation5]
        %v269 = vld [vmem:[%s268] sm:$0xff]
        %v270 = vld [vmem:[%s268 + $0x8] sm:$0xff]
        %271 = vmatprep.subr.mxu0 0.0
        %272 = vmatpush1.msra.mxu0 %v269
        %273 = vmatprep.subr.mxu0 0.0
        %274 = vmatpush1.msra.mxu0 %v270
        %275 = vmatprep.subr.mxu0 0.0
        %276 = vmatpush1.msra.mxu0 0.0
        %277 = vmatprep.subr.mxu0 0.0
        %278 = vmatpush1.msra.mxu0 0.0
        %279 = vmatprep.subr.mxu0 0.0
        %280 = vmatpush1.msra.mxu0 0.0
        %281 = vmatprep.subr.mxu0 0.0
        %282 = vmatpush1.msra.mxu0 0.0
        %283 = vmatprep.subr.mxu0 0.0
        %284 = vmatpush1.msra.mxu0 0.0
        %285 = vmatprep.subr.mxu0 0.0
        %286 = vmatpush1.msra.mxu0 0.0
        %287 = vmatprep.subr.mxu0 0.0
        %288 = vmatpush1.msra.mxu0 0.0
        %289 = vmatprep.subr.mxu0 0.0
        %290 = vmatpush1.msra.mxu0 0.0
        %291 = vmatprep.subr.mxu0 0.0
        %292 = vmatpush1.msra.mxu0 0.0
        %293 = vmatprep.subr.mxu0 0.0
        %294 = vmatpush1.msra.mxu0 0.0
        %295 = vmatprep.subr.mxu0 0.0
        %296 = vmatpush1.msra.mxu0 0.0
        %297 = vmatprep.subr.mxu0 0.0
        %298 = vmatpush1.msra.mxu0 0.0
        %299 = vmatprep.subr.mxu0 0.0
        %300 = vmatpush1.msra.mxu0 0.0
        %301 = vmatprep.subr.mxu0 0.0
        %302 = vmatpush1.msra.mxu0 0.0
        %303 = vmatprep.subr.mxu0 0.0
        %304 = vmatpush1.msra.mxu0 0.0
        %305 = vmatprep.subr.mxu0 0.0
        %306 = vmatpush1.msra.mxu0 0.0
        %307 = vmatprep.subr.mxu0 0.0
        %308 = vmatpush1.msra.mxu0 0.0
        %309 = vmatprep.subr.mxu0 0.0
        %310 = vmatpush1.msra.mxu0 0.0
        %311 = vmatprep.subr.mxu0 0.0
        %312 = vmatpush1.msra.mxu0 0.0
        %313 = vmatprep.subr.mxu0 0.0
        %314 = vmatpush1.msra.mxu0 0.0
        %315 = vmatprep.subr.mxu0 0.0
        %316 = vmatpush1.msra.mxu0 0.0
        %317 = vmatprep.subr.mxu0 0.0
        %318 = vmatpush1.msra.mxu0 0.0
        %319 = vmatprep.subr.mxu0 0.0
        %320 = vmatpush1.msra.mxu0 0.0
        %321 = vmatprep.subr.mxu0 0.0
        %322 = vmatpush1.msra.mxu0 0.0
        %323 = vmatprep.subr.mxu0 0.0
        %324 = vmatpush1.msra.mxu0 0.0
        %325 = vmatprep.subr.mxu0 0.0
        %326 = vmatpush1.msra.mxu0 0.0
        %327 = vmatprep.subr.mxu0 0.0
        %328 = vmatpush1.msra.mxu0 0.0
        %329 = vmatprep.subr.mxu0 0.0
        %330 = vmatpush1.msra.mxu0 0.0
        %331 = vmatprep.subr.mxu0 0.0
        %332 = vmatpush1.msra.mxu0 0.0
        %333 = vmatprep.subr.mxu0 0.0
        %334 = vmatpush1.msra.mxu0 0.0
        %335 = vmatprep.mubr.f32.mxu0 0.0
        %336 = vmatmul.mubr.f32.gmra.mrb[0].mxu0 %v186
        %v337 = vpop.f32.mrb[0].mxu0
        %v338 = vadd.f32 0.0, %v337
        %v339 = vpop.f32.mrb[0].mxu0
        %340 = vmatprep.mubr.f32.mxu0 0.0
        %341 = vmatmul.mubr.f32.gmra.mrb[0].mxu0 %v189
        %v342 = vpop.f32.mrb[0].mxu0
        %v343 = vadd.f32 0.0, %v342
        %v344 = vpop.f32.mrb[0].mxu0
        %345 = vdwg.mxu0
        %s346 = scalar_lea.vmem %s177, 16 [#allocation7]
        %347 = vst.msk [vmem:[%s346] sm:$0xff] %vm184, %v338
        %348 = vst.msk [vmem:[%s346 + $0x8] sm:$0xff] %vm184, %v343
        %s349 = sand.u32 %s75, 1
        %s350 = scalar_lea.sflag [#allocation4], %s349
        %s351 = sand.u32 %s75, 1
        %s352 = smul.addr %s351, 32
        %s353 = scalar_lea.vmem [#allocation7], %s352
        // Predicated region
        $region37: #{nconv.1} parent=27 // pred_check
          %p354 = pneg %p85
        $region38: #{nconv.1} parent=27 // pred_check_branch
          %356 = sbr.rel (%p354) target = $region40
        $region39: #{nconv.1} parent=27 // pred_region
          %s357 = smul.u32 2, %s20
          %s359 = ssub.s32 512, 512
          %360 = vsyncadd %s350, %s359
          %s361 = smul.addr %s357, 2
          %s362 = smul.addr %s361, 128
          %s363 = scalar_lea.hbm %s2, %s362
          %s364 = sshll.u32 %s353, 4
          %s365 = int_to_ptr.vmem [resolvable:$true] %s364
          %370 = dma.vmem_to_hbm [thread:$0]  %s365, 512, %s363, %s350, 128, 128, 8
        $region40: #{nconv.1} parent=27 // pred_fallthru
          _
      $region28: #{nconv.1} parent=5 // pred_fallthru
        _
      %p371 = scmp.le.s32.totalorder 2, %s15
      // Predicated region
      $region41: #{nconv.1} parent=5 // pred_check
        %p372 = pneg %p371
      $region42: #{nconv.1} parent=5 // pred_check_branch
        %374 = sbr.rel (%p372) target = $region44
      $region43: #{nconv.1} parent=5 // pred_region
        %s375 = ssub.s32 %s15, 2
        // Predicated region
        $region45: #{nconv.1} parent=43 // pred_check
          %p376 = pneg %p91
        $region46: #{nconv.1} parent=43 // pred_check_branch
          %378 = sbr.rel (%p376) target = $region48
        $region47: #{nconv.1} parent=43 // pred_region
          %s379 = sand.u32 %s76, 1
          %s380 = scalar_lea.sflag [#allocation4], %s379
          %s381 = sand.u32 %s76, 1
          %s382 = smul.addr %s381, 32
          %s383 = scalar_lea.vmem [#allocation7], %s382
          %384 = dma.done %s380, 512
        $region48: #{nconv.1} parent=43 // pred_fallthru
          _
      $region44: #{nconv.1} parent=5 // pred_fallthru
        _
    $region6: #{nconv.1} parent=1 // loop_footer
      %s19 = sadd.s32 1, %s15
    $region7: #{nconv.1} parent=1 // loop_footer_branch
      %14 = sbr.rel target = $region3
    $region8: #{nconv.1} parent=1 // loop_exit
      _
    %385 = vsyncpa [#allocation3], 1
    %s386 = scalar_lea.sflag [#allocation3], 1
    %387 = vsyncpa %s386, 1
    %388 = vsyncpa [#allocation6], 1
    %s389 = scalar_lea.sflag [#allocation6], 1
    %390 = vsyncpa %s389, 1
    %391 = vsyncpa [#allocation4], 1
    %s392 = scalar_lea.sflag [#allocation4], 1
    %393 = vsyncpa %s392, 1

</llo_original>
